<compile_context>
chip_gen: v7x
topology: tpu7x:2x2x1
jax: 0.10.0
libtpu: 0.0.40
codegen_flags: <defaults>
</compile_context>

<pallas_src>
import jax
import jax.numpy as jnp
from jax.experimental import pallas as pl
from jax.experimental.pallas import tpu as pltpu

C_IN, C_OUT = 20, 32
W, K = 20, 3
W_POOL = W // 2                           # 10 -> 32 * 10 = 320 flattened features
FEAT = C_OUT * W_POOL                     # 320
FEAT_PAD = ((FEAT + 127) // 128) * 128    # 384 (128-aligned half width)
HID, N_CLS = 16, 2
IN_LANES = C_IN * W                       # 400


def seq_kernel(x_ref, cw_ref, cb_ref, w1_ref, b1_ref, w2_ref, b2_ref, out_ref):
    # Conv2d(20,32,(1,3),'same') for every (c_out, w) as ONE bf16 matmul.
    conv = jnp.dot(x_ref[...], cw_ref[...],
                   preferred_element_type=jnp.float32)           # (TB, 768) f32
    conv = jnp.maximum(conv + cb_ref[...], 0.0)                  # bias + ReLU

    # MaxPool2d((1,2)): even-w / odd-w conv columns live in the two 128-aligned
    # halves, so pooling is a single elementwise max (no strided slices).
    pooled = jnp.maximum(conv[:, :FEAT_PAD], conv[:, FEAT_PAD:])  # (TB, 384)

    # Flatten + Linear(320,16) (pad lanes hit zero weight rows) + ReLU.
    h = jnp.dot(pooled, w1_ref[...],
                preferred_element_type=jnp.float32) + b1_ref[...]
    h = jnp.maximum(h, 0.0)                                       # (TB, 16)

    # Linear(16,2) + Softmax(dim=1), numerically stable.
    logits = jnp.dot(h, w2_ref[...],
                     preferred_element_type=jnp.float32) + b2_ref[...]
    m = jnp.max(logits, axis=-1, keepdims=True)
    e = jnp.exp(logits - m)
    out_ref[...] = e / jnp.sum(e, axis=-1, keepdims=True)


def build_params(key):
    """Deterministic synthetic parameters in PyTorch layouts."""
    ks = jax.random.split(key, 6)
    conv_w = jax.random.normal(ks[0], (C_OUT, C_IN, 1, K), jnp.float32) * 0.10
    conv_b = jax.random.normal(ks[1], (C_OUT,), jnp.float32) * 0.10
    fc1_w = jax.random.normal(ks[2], (HID, C_OUT * W_POOL), jnp.float32) * 0.05
    fc1_b = jax.random.normal(ks[3], (HID,), jnp.float32) * 0.05
    fc2_w = jax.random.normal(ks[4], (N_CLS, HID), jnp.float32) * 0.05
    fc2_b = jax.random.normal(ks[5], (N_CLS,), jnp.float32) * 0.05
    return conv_w, conv_b, fc1_w, fc1_b, fc2_w, fc2_b


def _pack_params(params):
    """Host-side layout plumbing: build the banded conv matrix & padded fc1."""
    conv_w, conv_b, fc1_w, fc1_b, fc2_w, fc2_b = params

    # Dense conv-as-matmul matrix A[ci*W + wi, co*W + wo] =
    #   conv_w[co, ci, 0, wi - wo + 1] when 0 <= wi - wo + 1 < K else 0.
    w_taps = jnp.transpose(conv_w[:, :, 0, :], (1, 0, 2))        # (C_IN, C_OUT, K)
    wi = jnp.arange(W)[:, None]
    wo = jnp.arange(W)[None, :]
    k_idx = wi - wo + 1                                          # (W, W)
    valid = ((k_idx >= 0) & (k_idx < K)).astype(jnp.float32)
    k_safe = jnp.clip(k_idx, 0, K - 1)
    band = w_taps[:, :, k_safe] * valid[None, None]              # (C_IN, C_OUT, W, W)
    A = jnp.transpose(band, (0, 2, 1, 3)).reshape(IN_LANES, C_OUT * W)  # (400, 640)

    # Column ordering for the kernel: lane l = co*W_POOL + p (== PyTorch flatten
    # order), even-w columns in half 0, odd-w columns in half 1, each half
    # zero-padded to FEAT_PAD = 384 lanes.
    co = jnp.arange(C_OUT)[:, None]
    p = jnp.arange(W_POOL)[None, :]
    even_idx = (co * W + 2 * p).reshape(-1)                      # (320,)
    odd_idx = (co * W + 2 * p + 1).reshape(-1)
    zpad_w = jnp.zeros((IN_LANES, FEAT_PAD - FEAT), jnp.float32)
    cw_banded = jnp.concatenate(
        [A[:, even_idx], zpad_w, A[:, odd_idx], zpad_w], axis=1
    ).astype(jnp.bfloat16)                                       # (400, 768) bf16

    cbv = jnp.repeat(conv_b, W_POOL)                             # (320,)
    zpad_b = jnp.zeros((FEAT_PAD - FEAT,), jnp.float32)
    cb_row = jnp.concatenate([cbv, zpad_b, cbv, zpad_b]).reshape(1, 2 * FEAT_PAD)

    # fc1: PyTorch flatten index is exactly co*W_POOL + p; pad lanes -> zero rows.
    w1p = jnp.concatenate(
        [fc1_w.T, jnp.zeros((FEAT_PAD - FEAT, HID), jnp.float32)], axis=0)  # (384, 16)
    b1 = fc1_b.reshape(1, HID)
    w2 = fc2_w.T                                                 # (HID, N_CLS)
    b2 = fc2_b.reshape(1, N_CLS)
    return cw_banded, cb_row, w1p, b1, w2, b2


def seq_32x1_16_filt3(x_nchw, params, *, block_b=512):
    B = x_nchw.shape[0]
    cw_banded, cb_row, w1p, b1, w2, b2 = _pack_params(params)

    # x: NCHW (B, 20, 1, 20) -> (B, C_IN*W) bf16, lane index = ci*W + wi.
    x2 = x_nchw[:, :, 0, :].reshape(B, IN_LANES).astype(jnp.bfloat16)

    tb = min(block_b, ((B + 7) // 8) * 8)          # batch tile, multiple of 8
    b_pad = ((B + tb - 1) // tb) * tb
    if b_pad != B:
        x2 = jnp.pad(x2, ((0, b_pad - B), (0, 0)))
    grid = (b_pad // tb,)

    cost = pl.CostEstimate(
        flops=b_pad * (2 * IN_LANES * 2 * FEAT_PAD
                       + 2 * FEAT_PAD * HID + 2 * HID * N_CLS),
        transcendentals=b_pad * N_CLS,
        bytes_accessed=(x2.size * 2 + cw_banded.size * 2 + b_pad * N_CLS * 4
                        + (cb_row.size + w1p.size + b1.size + w2.size + b2.size) * 4),
    )

    out = pl.pallas_call(
        seq_kernel,
        out_shape=jax.ShapeDtypeStruct((b_pad, N_CLS), jnp.float32),
        grid_spec=pltpu.PrefetchScalarGridSpec(
            num_scalar_prefetch=0,
            grid=grid,
            in_specs=[
                pl.BlockSpec((tb, IN_LANES), lambda i: (i, 0)),            # x (pipelined)
                pl.BlockSpec((IN_LANES, 2 * FEAT_PAD), lambda i: (0, 0)),  # resident
                pl.BlockSpec((1, 2 * FEAT_PAD), lambda i: (0, 0)),
                pl.BlockSpec((FEAT_PAD, HID), lambda i: (0, 0)),
                pl.BlockSpec((1, HID), lambda i: (0, 0)),
                pl.BlockSpec((HID, N_CLS), lambda i: (0, 0)),
                pl.BlockSpec((1, N_CLS), lambda i: (0, 0)),
            ],
            out_specs=pl.BlockSpec((tb, N_CLS), lambda i: (i, 0)),
        ),
        compiler_params=pltpu.CompilerParams(
            dimension_semantics=("parallel",)),
        cost_estimate=cost,
    )(x2, cw_banded, cb_row, w1p, b1, w2, b2)
    return out[:B]


def reference(x_nchw, params):
    """Pure-JAX reference mirroring PyTorch NCHW semantics, fed the same
    bf16-quantized x / conv weights as the kernel (accumulation in f32)."""
    conv_w, conv_b, fc1_w, fc1_b, fc2_w, fc2_b = params
    x = x_nchw.astype(jnp.bfloat16).astype(jnp.float32)[:, :, 0, :]   # (B, C_in, W)
    cw = conv_w.astype(jnp.bfloat16).astype(jnp.float32)
    xp = jnp.pad(x, ((0, 0), (0, 0), (1, 1)))
    conv = jnp.zeros((x.shape[0], C_OUT, W), jnp.float32)
    for k in range(K):
        conv = conv + jnp.einsum('bcw,oc->bow', xp[:, :, k:k + W], cw[:, :, 0, k])
    conv = jax.nn.relu(conv + conv_b[None, :, None])
    pooled = jnp.max(conv.reshape(-1, C_OUT, W_POOL, 2), axis=-1)     # (B, C_out, W_pool)
    flat = pooled.reshape(x.shape[0], C_OUT * W_POOL)                 # PyTorch flatten order
    h = jax.nn.relu(jnp.dot(flat, fc1_w.T,
                            precision=jax.lax.Precision.HIGHEST) + fc1_b)
    logits = jnp.dot(h, fc2_w.T, precision=jax.lax.Precision.HIGHEST) + fc2_b
    return jax.nn.softmax(logits, axis=1)


if __name__ == "__main__":
    key = jax.random.PRNGKey(0)
    k_x, k_p = jax.random.split(key)

    B = 2
    x = jax.random.normal(k_x, (B, C_IN, 1, W), jnp.float32)   # NCHW: (2, 20, 1, 20)
    params = build_params(k_p)

    out = seq_32x1_16_filt3(x, params)
    out = jax.block_until_ready(out)

    ref = reference(x, params)
    assert out.shape == (B, N_CLS)
    assert jnp.allclose(out, ref, atol=2e-3, rtol=2e-3), (out, ref)
    assert jnp.allclose(jnp.sum(out, axis=-1), 1.0, atol=1e-5)

    print("KERNEL_OK")
</pallas_src>

<mosaic_0001>
module attributes {stable_mosaic.version = 11 : i64} {
  func.func @seq_kernel(%arg0: i32, %arg1: memref<8x400xbf16, #tpu.memory_space<vmem>>, %arg2: memref<400x768xbf16, #tpu.memory_space<vmem>>, %arg3: memref<1x768xf32, #tpu.memory_space<vmem>>, %arg4: memref<384x16xf32, #tpu.memory_space<vmem>>, %arg5: memref<1x16xf32, #tpu.memory_space<vmem>>, %arg6: memref<16x2xf32, #tpu.memory_space<vmem>>, %arg7: memref<1x2xf32, #tpu.memory_space<vmem>>, %arg8: memref<8x2xf32, #tpu.memory_space<vmem>>) attributes {dimension_semantics = [#tpu.dimension_semantics<parallel>], iteration_bounds = array<i64: 1>, scalar_prefetch = 0 : i64, scratch_operands = 0 : i64, tpu.core_type = #tpu.core_type<tc>, window_params = [{transform_indices = @transform_0, window_bounds = array<i64: 8, 400>}, {pipeline_mode = #tpu.pipeline_mode<synchronous>, transform_indices = @transform_1, window_bounds = array<i64: 400, 768>}, {pipeline_mode = #tpu.pipeline_mode<synchronous>, transform_indices = @transform_2, window_bounds = array<i64: 1, 768>}, {pipeline_mode = #tpu.pipeline_mode<synchronous>, transform_indices = @transform_3, window_bounds = array<i64: 384, 16>}, {pipeline_mode = #tpu.pipeline_mode<synchronous>, transform_indices = @transform_4, window_bounds = array<i64: 1, 16>}, {pipeline_mode = #tpu.pipeline_mode<synchronous>, transform_indices = @transform_5, window_bounds = array<i64: 16, 2>}, {pipeline_mode = #tpu.pipeline_mode<synchronous>, transform_indices = @transform_6, window_bounds = array<i64: 1, 2>}, {transform_indices = @transform_7, window_bounds = array<i64: 8, 2>}]} {
    %c0 = arith.constant 0 : index
    %c0_0 = arith.constant 0 : index
    %0 = vector.load %arg1[%c0, %c0_0] : memref<8x400xbf16, #tpu.memory_space<vmem>>, vector<8x400xbf16>
    %c0_1 = arith.constant 0 : index
    %c0_2 = arith.constant 0 : index
    %1 = vector.load %arg2[%c0_1, %c0_2] : memref<400x768xbf16, #tpu.memory_space<vmem>>, vector<400x768xbf16>
    %cst = arith.constant dense<0.000000e+00> : vector<8x768xf32>
    %2 = tpu.matmul %0, %1, %cst {dimension_numbers = #tpu.dot_dimension_numbers<[1], [0], [0], [1], [0, 0, 1, 1], [], []>} : vector<8x400xbf16>, vector<400x768xbf16>, vector<8x768xf32> -> vector<8x768xf32>
    %c0_3 = arith.constant 0 : index
    %c0_4 = arith.constant 0 : index
    %3 = vector.load %arg3[%c0_3, %c0_4] : memref<1x768xf32, #tpu.memory_space<vmem>>, vector<1x768xf32>
    %4 = vector.broadcast %3 : vector<1x768xf32> to vector<8x768xf32>
    %5 = arith.addf %2, %4 : vector<8x768xf32>
    %cst_5 = arith.constant 0.000000e+00 : f32
    %6 = vector.broadcast %cst_5 : f32 to vector<8x768xf32>
    %7 = arith.maximumf %5, %6 : vector<8x768xf32>
    %8 = vector.extract_strided_slice %7 {offsets = [0, 0], sizes = [8, 384], strides = [1, 1]} : vector<8x768xf32> to vector<8x384xf32>
    %9 = vector.extract_strided_slice %7 {offsets = [0, 384], sizes = [8, 384], strides = [1, 1]} : vector<8x768xf32> to vector<8x384xf32>
    %10 = arith.maximumf %8, %9 : vector<8x384xf32>
    %c0_6 = arith.constant 0 : index
    %c0_7 = arith.constant 0 : index
    %11 = vector.load %arg4[%c0_6, %c0_7] : memref<384x16xf32, #tpu.memory_space<vmem>>, vector<384x16xf32>
    %cst_8 = arith.constant dense<0.000000e+00> : vector<8x16xf32>
    %12 = tpu.matmul %10, %11, %cst_8 {dimension_numbers = #tpu.dot_dimension_numbers<[1], [0], [0], [1], [0, 0, 1, 1], [], []>} : vector<8x384xf32>, vector<384x16xf32>, vector<8x16xf32> -> vector<8x16xf32>
    %c0_9 = arith.constant 0 : index
    %c0_10 = arith.constant 0 : index
    %13 = vector.load %arg5[%c0_9, %c0_10] : memref<1x16xf32, #tpu.memory_space<vmem>>, vector<1x16xf32>
    %14 = vector.broadcast %13 : vector<1x16xf32> to vector<8x16xf32>
    %15 = arith.addf %12, %14 : vector<8x16xf32>
    %cst_11 = arith.constant 0.000000e+00 : f32
    %16 = vector.broadcast %cst_11 : f32 to vector<8x16xf32>
    %17 = arith.maximumf %15, %16 : vector<8x16xf32>
    %c0_12 = arith.constant 0 : index
    %c0_13 = arith.constant 0 : index
    %18 = vector.load %arg6[%c0_12, %c0_13] : memref<16x2xf32, #tpu.memory_space<vmem>>, vector<16x2xf32>
    %cst_14 = arith.constant dense<0.000000e+00> : vector<8x2xf32>
    %19 = tpu.matmul %17, %18, %cst_14 {dimension_numbers = #tpu.dot_dimension_numbers<[1], [0], [0], [1], [0, 0, 1, 1], [], []>} : vector<8x16xf32>, vector<16x2xf32>, vector<8x2xf32> -> vector<8x2xf32>
    %c0_15 = arith.constant 0 : index
    %c0_16 = arith.constant 0 : index
    %20 = vector.load %arg7[%c0_15, %c0_16] : memref<1x2xf32, #tpu.memory_space<vmem>>, vector<1x2xf32>
    %21 = vector.broadcast %20 : vector<1x2xf32> to vector<8x2xf32>
    %22 = arith.addf %19, %21 : vector<8x2xf32>
    %cst_17 = arith.constant dense<0xFF800000> : vector<8xf32>
    %23 = vector.multi_reduction <maximumf>, %22, %cst_17 [1] : vector<8x2xf32> to vector<8xf32>
    %24 = vector.shape_cast %23 : vector<8xf32> to vector<8x1xf32>
    %25 = vector.broadcast %24 : vector<8x1xf32> to vector<8x2xf32>
    %26 = arith.subf %22, %25 : vector<8x2xf32>
    %27 = math.exp %26 : vector<8x2xf32>
    %cst_18 = arith.constant dense<0.000000e+00> : vector<8xf32>
    %28 = vector.multi_reduction <add>, %27, %cst_18 [1] : vector<8x2xf32> to vector<8xf32>
    %29 = vector.shape_cast %28 : vector<8xf32> to vector<8x1xf32>
    %30 = vector.broadcast %29 : vector<8x1xf32> to vector<8x2xf32>
    %31 = arith.divf %27, %30 : vector<8x2xf32>
    %c0_19 = arith.constant 0 : index
    %c0_20 = arith.constant 0 : index
    %32 = vector.load %arg8[%c0_19, %c0_20] : memref<8x2xf32, #tpu.memory_space<vmem>>, vector<8x2xf32>
    tpu.vector_store %arg8[%c0_19, %c0_20], %31 {strides = array<i32>} : memref<8x2xf32, #tpu.memory_space<vmem>>, vector<8x2xf32>,
    return
  }
  func.func @transform_0(%arg0: i32) -> (i32, i32) {
    %c0_i32 = arith.constant 0 : i32
    %c0_i32_0 = arith.constant 0 : i32
    return %arg0, %c0_i32 : i32, i32
  }
  func.func @transform_1(%arg0: i32) -> (i32, i32) {
    %c0_i32 = arith.constant 0 : i32
    %c0_i32_0 = arith.constant 0 : i32
    %c0_i32_1 = arith.constant 0 : i32
    return %c0_i32, %c0_i32_0 : i32, i32
  }
  func.func @transform_2(%arg0: i32) -> (i32, i32) {
    %c0_i32 = arith.constant 0 : i32
    %c0_i32_0 = arith.constant 0 : i32
    %c0_i32_1 = arith.constant 0 : i32
    return %c0_i32, %c0_i32_0 : i32, i32
  }
  func.func @transform_3(%arg0: i32) -> (i32, i32) {
    %c0_i32 = arith.constant 0 : i32
    %c0_i32_0 = arith.constant 0 : i32
    %c0_i32_1 = arith.constant 0 : i32
    return %c0_i32, %c0_i32_0 : i32, i32
  }
  func.func @transform_4(%arg0: i32) -> (i32, i32) {
    %c0_i32 = arith.constant 0 : i32
    %c0_i32_0 = arith.constant 0 : i32
    %c0_i32_1 = arith.constant 0 : i32
    return %c0_i32, %c0_i32_0 : i32, i32
  }
  func.func @transform_5(%arg0: i32) -> (i32, i32) {
    %c0_i32 = arith.constant 0 : i32
    %c0_i32_0 = arith.constant 0 : i32
    %c0_i32_1 = arith.constant 0 : i32
    return %c0_i32, %c0_i32_0 : i32, i32
  }
  func.func @transform_6(%arg0: i32) -> (i32, i32) {
    %c0_i32 = arith.constant 0 : i32
    %c0_i32_0 = arith.constant 0 : i32
    %c0_i32_1 = arith.constant 0 : i32
    return %c0_i32, %c0_i32_0 : i32, i32
  }
  func.func @transform_7(%arg0: i32) -> (i32, i32) {
    %c0_i32 = arith.constant 0 : i32
    %c0_i32_0 = arith.constant 0 : i32
    return %arg0, %c0_i32 : i32, i32
  }
}

</mosaic_0001>

<llo_original>
// kernel: tpu_custom_call.1
$region0: #{tpu_custom_call.1}
  #allocation0 [shape = 'u32[]', space=smem, size = 0x4, offset = 0x4, fixed_abs, tag = 'smem constant byte address 0x4 - core index']
  #allocation1 [shape = 'u32[144,128]{1,0:T(1,128)}', space=vmem, size = 0x12000, scoped, tag = 'internal scratch']
  %s0 = inlined_call_operand.vmem [shape: bf16[8,400], index: 0, kind: input, shape index: {}]
  %s1 = inlined_call_operand.hbm [shape: bf16[400,768], index: 1, kind: input, shape index: {}]
  %s2 = inlined_call_operand.vmem [shape: f32[1,768], index: 2, kind: input, shape index: {}]
  %s3 = inlined_call_operand.vmem [shape: f32[384,16], index: 3, kind: input, shape index: {}]
  %s4 = inlined_call_operand.vmem [shape: f32[1,16], index: 4, kind: input, shape index: {}]
  %s5 = inlined_call_operand.vmem [shape: f32[16,2], index: 5, kind: input, shape index: {}]
  %s6 = inlined_call_operand.vmem [shape: f32[1,2], index: 6, kind: input, shape index: {}]
  %s7 = inlined_call_operand.vmem [shape: f32[8,2], index: 7, kind: output, shape index: {}]
  %s8 = sld [smem:[#allocation0]]
  $region42: #{tpu_custom_call.1} parent=0
    _
  %s10 = ssub.s32 1, %s8
  %s11 = scalar_select 0, %s10, %s8
  $region1: #{tpu_custom_call.1} parent=0
    #allocation2 [shape = 'u8[614400]{0}', space=vmem, size = 0x96000, scoped, tag = 'input window, operand 1, single buffered']
    #allocation3 [shape = 's32[1]{0}', space=sflag, size = 0x4, scoped, tag = 'scoped memory for tpu_custom_call.1']
    %12 = vsyncpa [#allocation3], 0
    // Predicated region
    $region2: #{tpu_custom_call.1} parent=1 // pred_check
      _
    $region3: #{tpu_custom_call.1} parent=1 // pred_check_branch
      %14 = sbr.rel (0) target = $region5
    $region4: #{tpu_custom_call.1} parent=1 // pred_region
      _
    $region5: #{tpu_custom_call.1} parent=1 // pred_fallthru
      _
    // Predicated region
    $region6: #{tpu_custom_call.1} parent=1 // pred_check
      _
    $region7: #{tpu_custom_call.1} parent=1 // pred_check_branch
      %16 = sbr.rel (0) target = $region9
    $region8: #{tpu_custom_call.1} parent=1 // pred_region
      %s18 = ssub.s32 19200, 19200
      %19 = vsyncadd [#allocation3], %s18
      %s20 = sshll.u32 [#allocation2], 4
      %s21 = int_to_ptr.vmem [resolvable:$true] %s20
      %26 = dma.hbm_to_vmem [thread:$0]  %s1, 19200, %s21, [#allocation3], 384, 384, 24
    $region9: #{tpu_custom_call.1} parent=1 // pred_fallthru
      _
    // Predicated region
    $region10: #{tpu_custom_call.1} parent=1 // pred_check
      _
    $region11: #{tpu_custom_call.1} parent=1 // pred_check_branch
      %28 = sbr.rel (0) target = $region13
    $region12: #{tpu_custom_call.1} parent=1 // pred_region
      _
    $region13: #{tpu_custom_call.1} parent=1 // pred_fallthru
      _
    // Predicated region
    $region14: #{tpu_custom_call.1} parent=1 // pred_check
      _
    $region15: #{tpu_custom_call.1} parent=1 // pred_check_branch
      %30 = sbr.rel (0) target = $region17
    $region16: #{tpu_custom_call.1} parent=1 // pred_region
      _
    $region17: #{tpu_custom_call.1} parent=1 // pred_fallthru
      _
    // Predicated region
    $region18: #{tpu_custom_call.1} parent=1 // pred_check
      _
    $region19: #{tpu_custom_call.1} parent=1 // pred_check_branch
      %32 = sbr.rel (0) target = $region21
    $region20: #{tpu_custom_call.1} parent=1 // pred_region
      _
    $region21: #{tpu_custom_call.1} parent=1 // pred_fallthru
      _
    // Predicated region
    $region22: #{tpu_custom_call.1} parent=1 // pred_check
      _
    $region23: #{tpu_custom_call.1} parent=1 // pred_check_branch
      %34 = sbr.rel (0) target = $region25
    $region24: #{tpu_custom_call.1} parent=1 // pred_region
      _
    $region25: #{tpu_custom_call.1} parent=1 // pred_fallthru
      _
    // Predicated region
    $region26: #{tpu_custom_call.1} parent=1 // pred_check
      _
    $region27: #{tpu_custom_call.1} parent=1 // pred_check_branch
      %36 = sbr.rel (0) target = $region29
    $region28: #{tpu_custom_call.1} parent=1 // pred_region
      _
    $region29: #{tpu_custom_call.1} parent=1 // pred_fallthru
      _
    // Predicated region
    $region30: #{tpu_custom_call.1} parent=1 // pred_check
      _
    $region31: #{tpu_custom_call.1} parent=1 // pred_check_branch
      %38 = sbr.rel (0) target = $region33
    $region32: #{tpu_custom_call.1} parent=1 // pred_region
      %39 = dma.done [#allocation3], 19200
    $region33: #{tpu_custom_call.1} parent=1 // pred_fallthru
      _
    %v41 = vld [vmem:[%s0] sm:$0xff]
    %v42 = vld [vmem:[%s0 + $0x8] sm:$0xff]
    %v43 = vld [vmem:[#allocation2] sm:$0xff]
    %v44 = vld [vmem:[#allocation2 + $0x8] sm:$0xff]
    %v45 = vld [vmem:[#allocation2 + $0x10] sm:$0xff]
    %v46 = vld [vmem:[#allocation2 + $0x18] sm:$0xff]
    %v47 = vld [vmem:[#allocation2 + $0x20] sm:$0xff]
    %v48 = vld [vmem:[#allocation2 + $0x28] sm:$0xff]
    %v49 = vld [vmem:[#allocation2 + $0x30] sm:$0xff]
    %v50 = vld [vmem:[#allocation2 + $0x38] sm:$0xff]
    %v51 = vld [vmem:[#allocation2 + $0x40] sm:$0xff]
    %v52 = vld [vmem:[#allocation2 + $0x48] sm:$0xff]
    %v53 = vld [vmem:[#allocation2 + $0x50] sm:$0xff]
    %v54 = vld [vmem:[#allocation2 + $0x58] sm:$0xff]
    %v55 = vld [vmem:[#allocation2 + $0x60] sm:$0xff]
    %v56 = vld [vmem:[#allocation2 + $0x68] sm:$0xff]
    %v57 = vld [vmem:[#allocation2 + $0x70] sm:$0xff]
    %v58 = vld [vmem:[#allocation2 + $0x78] sm:$0xff]
    %v59 = vld [vmem:[#allocation2 + $0x80] sm:$0xff]
    %v60 = vld [vmem:[#allocation2 + $0x88] sm:$0xff]
    %v61 = vld [vmem:[#allocation2 + $0x90] sm:$0xff]
    %v62 = vld [vmem:[#allocation2 + $0x98] sm:$0xff]
    %v63 = vld [vmem:[#allocation2 + $0xa0] sm:$0xff]
    %v64 = vld [vmem:[#allocation2 + $0xa8] sm:$0xff]
    %v65 = vld [vmem:[#allocation2 + $0xb0] sm:$0xff]
    %v66 = vld [vmem:[#allocation2 + $0xb8] sm:$0xff]
    %v67 = vld [vmem:[#allocation2 + $0xc0] sm:$0xff]
    %v68 = vld [vmem:[#allocation2 + $0xc8] sm:$0xff]
    %v69 = vld [vmem:[#allocation2 + $0xd0] sm:$0xff]
    %v70 = vld [vmem:[#allocation2 + $0xd8] sm:$0xff]
    %v71 = vld [vmem:[#allocation2 + $0xe0] sm:$0xff]
    %v72 = vld [vmem:[#allocation2 + $0xe8] sm:$0xff]
    %v73 = vld [vmem:[#allocation2 + $0xf0] sm:$0xff]
    %v74 = vld [vmem:[#allocation2 + $0xf8] sm:$0xff]
    %v75 = vld [vmem:[#allocation2 + $0x100] sm:$0xff]
    %v76 = vld [vmem:[#allocation2 + $0x108] sm:$0xff]
    %v77 = vld [vmem:[#allocation2 + $0x110] sm:$0xff]
    %v78 = vld [vmem:[#allocation2 + $0x118] sm:$0xff]
    %v79 = vld [vmem:[#allocation2 + $0x120] sm:$0xff]
    %v80 = vld [vmem:[#allocation2 + $0x128] sm:$0xff]
    %v81 = vld [vmem:[#allocation2 + $0x130] sm:$0xff]
    %v82 = vld [vmem:[#allocation2 + $0x138] sm:$0xff]
    %v83 = vld [vmem:[#allocation2 + $0x140] sm:$0xff]
    %v84 = vld [vmem:[#allocation2 + $0x148] sm:$0xff]
    %v85 = vld [vmem:[#allocation2 + $0x150] sm:$0xff]
    %v86 = vld [vmem:[#allocation2 + $0x158] sm:$0xff]
    %v87 = vld [vmem:[#allocation2 + $0x160] sm:$0xff]
    %v88 = vld [vmem:[#allocation2 + $0x168] sm:$0xff]
    %v89 = vld [vmem:[#allocation2 + $0x170] sm:$0xff]
    %v90 = vld [vmem:[#allocation2 + $0x178] sm:$0xff]
    %v91 = vld [vmem:[#allocation2 + $0x180] sm:$0xff]
    %v92 = vld [vmem:[#allocation2 + $0x188] sm:$0xff]
    %v93 = vld [vmem:[#allocation2 + $0x190] sm:$0xff]
    %v94 = vld [vmem:[#allocation2 + $0x198] sm:$0xff]
    %v95 = vld [vmem:[#allocation2 + $0x1a0] sm:$0xff]
    %v96 = vld [vmem:[#allocation2 + $0x1a8] sm:$0xff]
    %v97 = vld [vmem:[#allocation2 + $0x1b0] sm:$0xff]
    %v98 = vld [vmem:[#allocation2 + $0x1b8] sm:$0xff]
    %v99 = vld [vmem:[#allocation2 + $0x1c0] sm:$0xff]
    %v100 = vld [vmem:[#allocation2 + $0x1c8] sm:$0xff]
    %v101 = vld [vmem:[#allocation2 + $0x1d0] sm:$0xff]
    %v102 = vld [vmem:[#allocation2 + $0x1d8] sm:$0xff]
    %v103 = vld [vmem:[#allocation2 + $0x1e0] sm:$0xff]
    %v104 = vld [vmem:[#allocation2 + $0x1e8] sm:$0xff]
    %v105 = vld [vmem:[#allocation2 + $0x1f0] sm:$0xff]
    %v106 = vld [vmem:[#allocation2 + $0x1f8] sm:$0xff]
    %v107 = vld [vmem:[#allocation2 + $0x200] sm:$0xff]
    %v108 = vld [vmem:[#allocation2 + $0x208] sm:$0xff]
    %v109 = vld [vmem:[#allocation2 + $0x210] sm:$0xff]
    %v110 = vld [vmem:[#allocation2 + $0x218] sm:$0xff]
    %v111 = vld [vmem:[#allocation2 + $0x220] sm:$0xff]
    %v112 = vld [vmem:[#allocation2 + $0x228] sm:$0xff]
    %v113 = vld [vmem:[#allocation2 + $0x230] sm:$0xff]
    %v114 = vld [vmem:[#allocation2 + $0x238] sm:$0xff]
    %v115 = vld [vmem:[#allocation2 + $0x240] sm:$0xff]
    %v116 = vld [vmem:[#allocation2 + $0x248] sm:$0xff]
    %v117 = vld [vmem:[#allocation2 + $0x250] sm:$0xff]
    %v118 = vld [vmem:[#allocation2 + $0x258] sm:$0xff]
    %v119 = vld [vmem:[#allocation2 + $0x260] sm:$0xff]
    %v120 = vld [vmem:[#allocation2 + $0x268] sm:$0xff]
    %v121 = vld [vmem:[#allocation2 + $0x270] sm:$0xff]
    %v122 = vld [vmem:[#allocation2 + $0x278] sm:$0xff]
    %v123 = vld [vmem:[#allocation2 + $0x280] sm:$0xff]
    %v124 = vld [vmem:[#allocation2 + $0x288] sm:$0xff]
    %v125 = vld [vmem:[#allocation2 + $0x290] sm:$0xff]
    %v126 = vld [vmem:[#allocation2 + $0x298] sm:$0xff]
    %v127 = vld [vmem:[#allocation2 + $0x2a0] sm:$0xff]
    %v128 = vld [vmem:[#allocation2 + $0x2a8] sm:$0xff]
    %v129 = vld [vmem:[#allocation2 + $0x2b0] sm:$0xff]
    %v130 = vld [vmem:[#allocation2 + $0x2b8] sm:$0xff]
    %v131 = vld [vmem:[#allocation2 + $0x2c0] sm:$0xff]
    %v132 = vld [vmem:[#allocation2 + $0x2c8] sm:$0xff]
    %v133 = vld [vmem:[#allocation2 + $0x2d0] sm:$0xff]
    %v134 = vld [vmem:[#allocation2 + $0x2d8] sm:$0xff]
    %v135 = vld [vmem:[#allocation2 + $0x2e0] sm:$0xff]
    %v136 = vld [vmem:[#allocation2 + $0x2e8] sm:$0xff]
    %v137 = vld [vmem:[#allocation2 + $0x2f0] sm:$0xff]
    %v138 = vld [vmem:[#allocation2 + $0x2f8] sm:$0xff]
    %v139 = vld [vmem:[#allocation2 + $0x300] sm:$0xff]
    %v140 = vld [vmem:[#allocation2 + $0x308] sm:$0xff]
    %v141 = vld [vmem:[#allocation2 + $0x310] sm:$0xff]
    %v142 = vld [vmem:[#allocation2 + $0x318] sm:$0xff]
    %v143 = vld [vmem:[#allocation2 + $0x320] sm:$0xff]
    %v144 = vld [vmem:[#allocation2 + $0x328] sm:$0xff]
    %v145 = vld [vmem:[#allocation2 + $0x330] sm:$0xff]
    %v146 = vld [vmem:[#allocation2 + $0x338] sm:$0xff]
    %v147 = vld [vmem:[#allocation2 + $0x340] sm:$0xff]
    %v148 = vld [vmem:[#allocation2 + $0x348] sm:$0xff]
    %v149 = vld [vmem:[#allocation2 + $0x350] sm:$0xff]
    %v150 = vld [vmem:[#allocation2 + $0x358] sm:$0xff]
    %v151 = vld [vmem:[#allocation2 + $0x360] sm:$0xff]
    %v152 = vld [vmem:[#allocation2 + $0x368] sm:$0xff]
    %v153 = vld [vmem:[#allocation2 + $0x370] sm:$0xff]
    %v154 = vld [vmem:[#allocation2 + $0x378] sm:$0xff]
    %v155 = vld [vmem:[#allocation2 + $0x380] sm:$0xff]
    %v156 = vld [vmem:[#allocation2 + $0x388] sm:$0xff]
    %v157 = vld [vmem:[#allocation2 + $0x390] sm:$0xff]
    %v158 = vld [vmem:[#allocation2 + $0x398] sm:$0xff]
    %v159 = vld [vmem:[#allocation2 + $0x3a0] sm:$0xff]
    %v160 = vld [vmem:[#allocation2 + $0x3a8] sm:$0xff]
    %v161 = vld [vmem:[#allocation2 + $0x3b0] sm:$0xff]
    %v162 = vld [vmem:[#allocation2 + $0x3b8] sm:$0xff]
    %v163 = vld [vmem:[#allocation2 + $0x3c0] sm:$0xff]
    %v164 = vld [vmem:[#allocation2 + $0x3c8] sm:$0xff]
    %v165 = vld [vmem:[#allocation2 + $0x3d0] sm:$0xff]
    %v166 = vld [vmem:[#allocation2 + $0x3d8] sm:$0xff]
    %v167 = vld [vmem:[#allocation2 + $0x3e0] sm:$0xff]
    %v168 = vld [vmem:[#allocation2 + $0x3e8] sm:$0xff]
    %v169 = vld [vmem:[#allocation2 + $0x3f0] sm:$0xff]
    %v170 = vld [vmem:[#allocation2 + $0x3f8] sm:$0xff]
    %v171 = vld [vmem:[#allocation2 + $0x400] sm:$0xff]
    %v172 = vld [vmem:[#allocation2 + $0x408] sm:$0xff]
    %v173 = vld [vmem:[#allocation2 + $0x410] sm:$0xff]
    %v174 = vld [vmem:[#allocation2 + $0x418] sm:$0xff]
    %v175 = vld [vmem:[#allocation2 + $0x420] sm:$0xff]
    %v176 = vld [vmem:[#allocation2 + $0x428] sm:$0xff]
    %v177 = vld [vmem:[#allocation2 + $0x430] sm:$0xff]
    %v178 = vld [vmem:[#allocation2 + $0x438] sm:$0xff]
    %v179 = vld [vmem:[#allocation2 + $0x440] sm:$0xff]
    %v180 = vld [vmem:[#allocation2 + $0x448] sm:$0xff]
    %v181 = vld [vmem:[#allocation2 + $0x450] sm:$0xff]
    %v182 = vld [vmem:[#allocation2 + $0x458] sm:$0xff]
    %v183 = vld [vmem:[#allocation2 + $0x460] sm:$0xff]
    %v184 = vld [vmem:[#allocation2 + $0x468] sm:$0xff]
    %v185 = vld [vmem:[#allocation2 + $0x470] sm:$0xff]
    %v186 = vld [vmem:[#allocation2 + $0x478] sm:$0xff]
    %v187 = vld [vmem:[#allocation2 + $0x480] sm:$0xff]
    %v188 = vld [vmem:[#allocation2 + $0x488] sm:$0xff]
    %v189 = vld [vmem:[#allocation2 + $0x490] sm:$0xff]
    %v190 = vld [vmem:[#allocation2 + $0x498] sm:$0xff]
    %v191 = vld [vmem:[#allocation2 + $0x4a0] sm:$0xff]
    %v192 = vld [vmem:[#allocation2 + $0x4a8] sm:$0xff]
    %v193 = vld [vmem:[%s2] sm:$0x3f]
    %v195 = vlaneseq
    %v196 = vshrl.u32 %v195, 7
    %v197 = vsub.s32 0, %v196
    %v198 = vrot.slane %v193, %v197
    %v199 = vlaneseq
    %v200 = vshrl.u32 %v199, 7
    %v201 = vsub.s32 1, %v200
    %v202 = vrot.slane %v193, %v201
    %v203 = vlaneseq
    %v204 = vshrl.u32 %v203, 7
    %v205 = vsub.s32 2, %v204
    %v206 = vrot.slane %v193, %v205
    %v207 = vlaneseq
    %v208 = vshrl.u32 %v207, 7
    %v209 = vsub.s32 3, %v208
    %v210 = vrot.slane %v193, %v209
    %v211 = vlaneseq
    %v212 = vshrl.u32 %v211, 7
    %v213 = vsub.s32 4, %v212
    %v214 = vrot.slane %v193, %v213
    %v215 = vlaneseq
    %v216 = vshrl.u32 %v215, 7
    %v217 = vsub.s32 5, %v216
    %v218 = vrot.slane %v193, %v217
    %v227 = vunpack.c.l.b16 %v41
    %v228 = vunpack.c.h.b16 %v41
    %v229 = vunpack.c.l.b16 %v42
    %v230 = vunpack.c.h.b16 %v42
    %v231 = vpack.c.b16 %v227, %v227
    %v232 = vpack.c.b16 %v228, %v228
    %v233 = vpack.c.b16 %v229, %v229
    %v234 = vpack.c.b16 %v230, %v230
    %v388 = vunpack.c.l.b16 %v43
    %v389 = vunpack.c.h.b16 %v43
    %v390 = vunpack.c.l.b16 %v44
    %v391 = vunpack.c.h.b16 %v44
    %v392 = vunpack.c.l.b16 %v45
    %v393 = vunpack.c.h.b16 %v45
    %v394 = vunpack.c.l.b16 %v46
    %v395 = vunpack.c.h.b16 %v46
    %v396 = vunpack.c.l.b16 %v47
    %v397 = vunpack.c.h.b16 %v47
    %v398 = vunpack.c.l.b16 %v48
    %v399 = vunpack.c.h.b16 %v48
    %v400 = vunpack.c.l.b16 %v49
    %v401 = vunpack.c.h.b16 %v49
    %v402 = vunpack.c.l.b16 %v50
    %v403 = vunpack.c.h.b16 %v50
    %v404 = vunpack.c.l.b16 %v51
    %v405 = vunpack.c.h.b16 %v51
    %v406 = vunpack.c.l.b16 %v52
    %v407 = vunpack.c.h.b16 %v52
    %v408 = vunpack.c.l.b16 %v53
    %v409 = vunpack.c.h.b16 %v53
    %v410 = vunpack.c.l.b16 %v54
    %v411 = vunpack.c.h.b16 %v54
    %v412 = vunpack.c.l.b16 %v55
    %v413 = vunpack.c.h.b16 %v55
    %v414 = vunpack.c.l.b16 %v56
    %v415 = vunpack.c.h.b16 %v56
    %v416 = vunpack.c.l.b16 %v57
    %v417 = vunpack.c.h.b16 %v57
    %v418 = vunpack.c.l.b16 %v58
    %v419 = vunpack.c.h.b16 %v58
    %v420 = vunpack.c.l.b16 %v59
    %v421 = vunpack.c.h.b16 %v59
    %v422 = vunpack.c.l.b16 %v60
    %v423 = vunpack.c.h.b16 %v60
    %v424 = vunpack.c.l.b16 %v61
    %v425 = vunpack.c.h.b16 %v61
    %v426 = vunpack.c.l.b16 %v62
    %v427 = vunpack.c.h.b16 %v62
    %v428 = vunpack.c.l.b16 %v63
    %v429 = vunpack.c.h.b16 %v63
    %v430 = vunpack.c.l.b16 %v64
    %v431 = vunpack.c.h.b16 %v64
    %v432 = vunpack.c.l.b16 %v65
    %v433 = vunpack.c.h.b16 %v65
    %v434 = vunpack.c.l.b16 %v66
    %v435 = vunpack.c.h.b16 %v66
    %v436 = vunpack.c.l.b16 %v67
    %v437 = vunpack.c.h.b16 %v67
    %v438 = vunpack.c.l.b16 %v68
    %v439 = vunpack.c.h.b16 %v68
    %v440 = vunpack.c.l.b16 %v69
    %v441 = vunpack.c.h.b16 %v69
    %v442 = vunpack.c.l.b16 %v70
    %v443 = vunpack.c.h.b16 %v70
    %v444 = vunpack.c.l.b16 %v71
    %v445 = vunpack.c.h.b16 %v71
    %v446 = vunpack.c.l.b16 %v72
    %v447 = vunpack.c.h.b16 %v72
    %v448 = vunpack.c.l.b16 %v73
    %v449 = vunpack.c.h.b16 %v73
    %v450 = vunpack.c.l.b16 %v74
    %v451 = vunpack.c.h.b16 %v74
    %v452 = vunpack.c.l.b16 %v75
    %v453 = vunpack.c.h.b16 %v75
    %v454 = vunpack.c.l.b16 %v76
    %v455 = vunpack.c.h.b16 %v76
    %v456 = vunpack.c.l.b16 %v77
    %v457 = vunpack.c.h.b16 %v77
    %v458 = vunpack.c.l.b16 %v78
    %v459 = vunpack.c.h.b16 %v78
    %v460 = vunpack.c.l.b16 %v79
    %v461 = vunpack.c.h.b16 %v79
    %v462 = vunpack.c.l.b16 %v80
    %v463 = vunpack.c.h.b16 %v80
    %v464 = vunpack.c.l.b16 %v81
    %v465 = vunpack.c.h.b16 %v81
    %v466 = vunpack.c.l.b16 %v82
    %v467 = vunpack.c.h.b16 %v82
    %v468 = vunpack.c.l.b16 %v83
    %v469 = vunpack.c.h.b16 %v83
    %v470 = vunpack.c.l.b16 %v84
    %v471 = vunpack.c.h.b16 %v84
    %v472 = vunpack.c.l.b16 %v85
    %v473 = vunpack.c.h.b16 %v85
    %v474 = vunpack.c.l.b16 %v86
    %v475 = vunpack.c.h.b16 %v86
    %v476 = vunpack.c.l.b16 %v87
    %v477 = vunpack.c.h.b16 %v87
    %v478 = vunpack.c.l.b16 %v88
    %v479 = vunpack.c.h.b16 %v88
    %v480 = vunpack.c.l.b16 %v89
    %v481 = vunpack.c.h.b16 %v89
    %v482 = vunpack.c.l.b16 %v90
    %v483 = vunpack.c.h.b16 %v90
    %v484 = vunpack.c.l.b16 %v91
    %v485 = vunpack.c.h.b16 %v91
    %v486 = vunpack.c.l.b16 %v92
    %v487 = vunpack.c.h.b16 %v92
    %v488 = vunpack.c.l.b16 %v93
    %v489 = vunpack.c.h.b16 %v93
    %v490 = vunpack.c.l.b16 %v94
    %v491 = vunpack.c.h.b16 %v94
    %v492 = vunpack.c.l.b16 %v95
    %v493 = vunpack.c.h.b16 %v95
    %v494 = vunpack.c.l.b16 %v96
    %v495 = vunpack.c.h.b16 %v96
    %v496 = vunpack.c.l.b16 %v97
    %v497 = vunpack.c.h.b16 %v97
    %v498 = vunpack.c.l.b16 %v98
    %v499 = vunpack.c.h.b16 %v98
    %v500 = vunpack.c.l.b16 %v99
    %v501 = vunpack.c.h.b16 %v99
    %v502 = vunpack.c.l.b16 %v100
    %v503 = vunpack.c.h.b16 %v100
    %v504 = vunpack.c.l.b16 %v101
    %v505 = vunpack.c.h.b16 %v101
    %v506 = vunpack.c.l.b16 %v102
    %v507 = vunpack.c.h.b16 %v102
    %v508 = vunpack.c.l.b16 %v103
    %v509 = vunpack.c.h.b16 %v103
    %v510 = vunpack.c.l.b16 %v104
    %v511 = vunpack.c.h.b16 %v104
    %v512 = vunpack.c.l.b16 %v105
    %v513 = vunpack.c.h.b16 %v105
    %v514 = vunpack.c.l.b16 %v106
    %v515 = vunpack.c.h.b16 %v106
    %v516 = vunpack.c.l.b16 %v107
    %v517 = vunpack.c.h.b16 %v107
    %v518 = vunpack.c.l.b16 %v108
    %v519 = vunpack.c.h.b16 %v108
    %v520 = vunpack.c.l.b16 %v109
    %v521 = vunpack.c.h.b16 %v109
    %v522 = vunpack.c.l.b16 %v110
    %v523 = vunpack.c.h.b16 %v110
    %v524 = vunpack.c.l.b16 %v111
    %v525 = vunpack.c.h.b16 %v111
    %v526 = vunpack.c.l.b16 %v112
    %v527 = vunpack.c.h.b16 %v112
    %v528 = vunpack.c.l.b16 %v113
    %v529 = vunpack.c.h.b16 %v113
    %v530 = vunpack.c.l.b16 %v114
    %v531 = vunpack.c.h.b16 %v114
    %v532 = vunpack.c.l.b16 %v115
    %v533 = vunpack.c.h.b16 %v115
    %v534 = vunpack.c.l.b16 %v116
    %v535 = vunpack.c.h.b16 %v116
    %v536 = vunpack.c.l.b16 %v117
    %v537 = vunpack.c.h.b16 %v117
    %v538 = vunpack.c.l.b16 %v118
    %v539 = vunpack.c.h.b16 %v118
    %v540 = vunpack.c.l.b16 %v119
    %v541 = vunpack.c.h.b16 %v119
    %v542 = vunpack.c.l.b16 %v120
    %v543 = vunpack.c.h.b16 %v120
    %v544 = vunpack.c.l.b16 %v121
    %v545 = vunpack.c.h.b16 %v121
    %v546 = vunpack.c.l.b16 %v122
    %v547 = vunpack.c.h.b16 %v122
    %v548 = vunpack.c.l.b16 %v123
    %v549 = vunpack.c.h.b16 %v123
    %v550 = vunpack.c.l.b16 %v124
    %v551 = vunpack.c.h.b16 %v124
    %v552 = vunpack.c.l.b16 %v125
    %v553 = vunpack.c.h.b16 %v125
    %v554 = vunpack.c.l.b16 %v126
    %v555 = vunpack.c.h.b16 %v126
    %v556 = vunpack.c.l.b16 %v127
    %v557 = vunpack.c.h.b16 %v127
    %v558 = vunpack.c.l.b16 %v128
    %v559 = vunpack.c.h.b16 %v128
    %v560 = vunpack.c.l.b16 %v129
    %v561 = vunpack.c.h.b16 %v129
    %v562 = vunpack.c.l.b16 %v130
    %v563 = vunpack.c.h.b16 %v130
    %v564 = vunpack.c.l.b16 %v131
    %v565 = vunpack.c.h.b16 %v131
    %v566 = vunpack.c.l.b16 %v132
    %v567 = vunpack.c.h.b16 %v132
    %v568 = vunpack.c.l.b16 %v133
    %v569 = vunpack.c.h.b16 %v133
    %v570 = vunpack.c.l.b16 %v134
    %v571 = vunpack.c.h.b16 %v134
    %v572 = vunpack.c.l.b16 %v135
    %v573 = vunpack.c.h.b16 %v135
    %v574 = vunpack.c.l.b16 %v136
    %v575 = vunpack.c.h.b16 %v136
    %v576 = vunpack.c.l.b16 %v137
    %v577 = vunpack.c.h.b16 %v137
    %v578 = vunpack.c.l.b16 %v138
    %v579 = vunpack.c.h.b16 %v138
    %v580 = vunpack.c.l.b16 %v139
    %v581 = vunpack.c.h.b16 %v139
    %v582 = vunpack.c.l.b16 %v140
    %v583 = vunpack.c.h.b16 %v140
    %v584 = vunpack.c.l.b16 %v141
    %v585 = vunpack.c.h.b16 %v141
    %v586 = vunpack.c.l.b16 %v142
    %v587 = vunpack.c.h.b16 %v142
    %v588 = vunpack.c.l.b16 %v143
    %v589 = vunpack.c.h.b16 %v143
    %v590 = vunpack.c.l.b16 %v144
    %v591 = vunpack.c.h.b16 %v144
    %v592 = vunpack.c.l.b16 %v145
    %v593 = vunpack.c.h.b16 %v145
    %v594 = vunpack.c.l.b16 %v146
    %v595 = vunpack.c.h.b16 %v146
    %v596 = vunpack.c.l.b16 %v147
    %v597 = vunpack.c.h.b16 %v147
    %v598 = vunpack.c.l.b16 %v148
    %v599 = vunpack.c.h.b16 %v148
    %v600 = vunpack.c.l.b16 %v149
    %v601 = vunpack.c.h.b16 %v149
    %v602 = vunpack.c.l.b16 %v150
    %v603 = vunpack.c.h.b16 %v150
    %v604 = vunpack.c.l.b16 %v151
    %v605 = vunpack.c.h.b16 %v151
    %v606 = vunpack.c.l.b16 %v152
    %v607 = vunpack.c.h.b16 %v152
    %v608 = vunpack.c.l.b16 %v153
    %v609 = vunpack.c.h.b16 %v153
    %v610 = vunpack.c.l.b16 %v154
    %v611 = vunpack.c.h.b16 %v154
    %v612 = vunpack.c.l.b16 %v155
    %v613 = vunpack.c.h.b16 %v155
    %v614 = vunpack.c.l.b16 %v156
    %v615 = vunpack.c.h.b16 %v156
    %v616 = vunpack.c.l.b16 %v157
    %v617 = vunpack.c.h.b16 %v157
    %v618 = vunpack.c.l.b16 %v158
    %v619 = vunpack.c.h.b16 %v158
    %v620 = vunpack.c.l.b16 %v159
    %v621 = vunpack.c.h.b16 %v159
    %v622 = vunpack.c.l.b16 %v160
    %v623 = vunpack.c.h.b16 %v160
    %v624 = vunpack.c.l.b16 %v161
    %v625 = vunpack.c.h.b16 %v161
    %v626 = vunpack.c.l.b16 %v162
    %v627 = vunpack.c.h.b16 %v162
    %v628 = vunpack.c.l.b16 %v163
    %v629 = vunpack.c.h.b16 %v163
    %v630 = vunpack.c.l.b16 %v164
    %v631 = vunpack.c.h.b16 %v164
    %v632 = vunpack.c.l.b16 %v165
    %v633 = vunpack.c.h.b16 %v165
    %v634 = vunpack.c.l.b16 %v166
    %v635 = vunpack.c.h.b16 %v166
    %v636 = vunpack.c.l.b16 %v167
    %v637 = vunpack.c.h.b16 %v167
    %v638 = vunpack.c.l.b16 %v168
    %v639 = vunpack.c.h.b16 %v168
    %v640 = vunpack.c.l.b16 %v169
    %v641 = vunpack.c.h.b16 %v169
    %v642 = vunpack.c.l.b16 %v170
    %v643 = vunpack.c.h.b16 %v170
    %v644 = vunpack.c.l.b16 %v171
    %v645 = vunpack.c.h.b16 %v171
    %v646 = vunpack.c.l.b16 %v172
    %v647 = vunpack.c.h.b16 %v172
    %v648 = vunpack.c.l.b16 %v173
    %v649 = vunpack.c.h.b16 %v173
    %v650 = vunpack.c.l.b16 %v174
    %v651 = vunpack.c.h.b16 %v174
    %v652 = vunpack.c.l.b16 %v175
    %v653 = vunpack.c.h.b16 %v175
    %v654 = vunpack.c.l.b16 %v176
    %v655 = vunpack.c.h.b16 %v176
    %v656 = vunpack.c.l.b16 %v177
    %v657 = vunpack.c.h.b16 %v177
    %v658 = vunpack.c.l.b16 %v178
    %v659 = vunpack.c.h.b16 %v178
    %v660 = vunpack.c.l.b16 %v179
    %v661 = vunpack.c.h.b16 %v179
    %v662 = vunpack.c.l.b16 %v180
    %v663 = vunpack.c.h.b16 %v180
    %v664 = vunpack.c.l.b16 %v181
    %v665 = vunpack.c.h.b16 %v181
    %v666 = vunpack.c.l.b16 %v182
    %v667 = vunpack.c.h.b16 %v182
    %v668 = vunpack.c.l.b16 %v183
    %v669 = vunpack.c.h.b16 %v183
    %v670 = vunpack.c.l.b16 %v184
    %v671 = vunpack.c.h.b16 %v184
    %v672 = vunpack.c.l.b16 %v185
    %v673 = vunpack.c.h.b16 %v185
    %v674 = vunpack.c.l.b16 %v186
    %v675 = vunpack.c.h.b16 %v186
    %v676 = vunpack.c.l.b16 %v187
    %v677 = vunpack.c.h.b16 %v187
    %v678 = vunpack.c.l.b16 %v188
    %v679 = vunpack.c.h.b16 %v188
    %v680 = vunpack.c.l.b16 %v189
    %v681 = vunpack.c.h.b16 %v189
    %v682 = vunpack.c.l.b16 %v190
    %v683 = vunpack.c.h.b16 %v190
    %v684 = vunpack.c.l.b16 %v191
    %v685 = vunpack.c.h.b16 %v191
    %v686 = vunpack.c.l.b16 %v192
    %v687 = vunpack.c.h.b16 %v192
    %v688 = vpack.c.b16 %v394, %v388
    %v689 = vpack.c.b16 %v395, %v389
    %v690 = vpack.c.b16 %v396, %v390
    %v691 = vpack.c.b16 %v397, %v391
    %v692 = vpack.c.b16 %v398, %v392
    %v693 = vpack.c.b16 %v399, %v393
    %v694 = vpack.c.b16 %v406, %v400
    %v695 = vpack.c.b16 %v407, %v401
    %v696 = vpack.c.b16 %v408, %v402
    %v697 = vpack.c.b16 %v409, %v403
    %v698 = vpack.c.b16 %v410, %v404
    %v699 = vpack.c.b16 %v411, %v405
    %v700 = vpack.c.b16 %v418, %v412
    %v701 = vpack.c.b16 %v419, %v413
    %v702 = vpack.c.b16 %v420, %v414
    %v703 = vpack.c.b16 %v421, %v415
    %v704 = vpack.c.b16 %v422, %v416
    %v705 = vpack.c.b16 %v423, %v417
    %v706 = vpack.c.b16 %v430, %v424
    %v707 = vpack.c.b16 %v431, %v425
    %v708 = vpack.c.b16 %v432, %v426
    %v709 = vpack.c.b16 %v433, %v427
    %v710 = vpack.c.b16 %v434, %v428
    %v711 = vpack.c.b16 %v435, %v429
    %v712 = vpack.c.b16 %v442, %v436
    %v713 = vpack.c.b16 %v443, %v437
    %v714 = vpack.c.b16 %v444, %v438
    %v715 = vpack.c.b16 %v445, %v439
    %v716 = vpack.c.b16 %v446, %v440
    %v717 = vpack.c.b16 %v447, %v441
    %v718 = vpack.c.b16 %v454, %v448
    %v719 = vpack.c.b16 %v455, %v449
    %v720 = vpack.c.b16 %v456, %v450
    %v721 = vpack.c.b16 %v457, %v451
    %v722 = vpack.c.b16 %v458, %v452
    %v723 = vpack.c.b16 %v459, %v453
    %v724 = vpack.c.b16 %v466, %v460
    %v725 = vpack.c.b16 %v467, %v461
    %v726 = vpack.c.b16 %v468, %v462
    %v727 = vpack.c.b16 %v469, %v463
    %v728 = vpack.c.b16 %v470, %v464
    %v729 = vpack.c.b16 %v471, %v465
    %v730 = vpack.c.b16 %v478, %v472
    %v731 = vpack.c.b16 %v479, %v473
    %v732 = vpack.c.b16 %v480, %v474
    %v733 = vpack.c.b16 %v481, %v475
    %v734 = vpack.c.b16 %v482, %v476
    %v735 = vpack.c.b16 %v483, %v477
    %v736 = vpack.c.b16 %v490, %v484
    %v737 = vpack.c.b16 %v491, %v485
    %v738 = vpack.c.b16 %v492, %v486
    %v739 = vpack.c.b16 %v493, %v487
    %v740 = vpack.c.b16 %v494, %v488
    %v741 = vpack.c.b16 %v495, %v489
    %v742 = vpack.c.b16 %v502, %v496
    %v743 = vpack.c.b16 %v503, %v497
    %v744 = vpack.c.b16 %v504, %v498
    %v745 = vpack.c.b16 %v505, %v499
    %v746 = vpack.c.b16 %v506, %v500
    %v747 = vpack.c.b16 %v507, %v501
    %v748 = vpack.c.b16 %v514, %v508
    %v749 = vpack.c.b16 %v515, %v509
    %v750 = vpack.c.b16 %v516, %v510
    %v751 = vpack.c.b16 %v517, %v511
    %v752 = vpack.c.b16 %v518, %v512
    %v753 = vpack.c.b16 %v519, %v513
    %v754 = vpack.c.b16 %v526, %v520
    %v755 = vpack.c.b16 %v527, %v521
    %v756 = vpack.c.b16 %v528, %v522
    %v757 = vpack.c.b16 %v529, %v523
    %v758 = vpack.c.b16 %v530, %v524
    %v759 = vpack.c.b16 %v531, %v525
    %v760 = vpack.c.b16 %v538, %v532
    %v761 = vpack.c.b16 %v539, %v533
    %v762 = vpack.c.b16 %v540, %v534
    %v763 = vpack.c.b16 %v541, %v535
    %v764 = vpack.c.b16 %v542, %v536
    %v765 = vpack.c.b16 %v543, %v537
    %v766 = vpack.c.b16 %v550, %v544
    %v767 = vpack.c.b16 %v551, %v545
    %v768 = vpack.c.b16 %v552, %v546
    %v769 = vpack.c.b16 %v553, %v547
    %v770 = vpack.c.b16 %v554, %v548
    %v771 = vpack.c.b16 %v555, %v549
    %v772 = vpack.c.b16 %v562, %v556
    %v773 = vpack.c.b16 %v563, %v557
    %v774 = vpack.c.b16 %v564, %v558
    %v775 = vpack.c.b16 %v565, %v559
    %v776 = vpack.c.b16 %v566, %v560
    %v777 = vpack.c.b16 %v567, %v561
    %v778 = vpack.c.b16 %v574, %v568
    %v779 = vpack.c.b16 %v575, %v569
    %v780 = vpack.c.b16 %v576, %v570
    %v781 = vpack.c.b16 %v577, %v571
    %v782 = vpack.c.b16 %v578, %v572
    %v783 = vpack.c.b16 %v579, %v573
    %v784 = vpack.c.b16 %v586, %v580
    %v785 = vpack.c.b16 %v587, %v581
    %v786 = vpack.c.b16 %v588, %v582
    %v787 = vpack.c.b16 %v589, %v583
    %v788 = vpack.c.b16 %v590, %v584
    %v789 = vpack.c.b16 %v591, %v585
    %v790 = vpack.c.b16 %v598, %v592
    %v791 = vpack.c.b16 %v599, %v593
    %v792 = vpack.c.b16 %v600, %v594
    %v793 = vpack.c.b16 %v601, %v595
    %v794 = vpack.c.b16 %v602, %v596
    %v795 = vpack.c.b16 %v603, %v597
    %v796 = vpack.c.b16 %v610, %v604
    %v797 = vpack.c.b16 %v611, %v605
    %v798 = vpack.c.b16 %v612, %v606
    %v799 = vpack.c.b16 %v613, %v607
    %v800 = vpack.c.b16 %v614, %v608
    %v801 = vpack.c.b16 %v615, %v609
    %v802 = vpack.c.b16 %v622, %v616
    %v803 = vpack.c.b16 %v623, %v617
    %v804 = vpack.c.b16 %v624, %v618
    %v805 = vpack.c.b16 %v625, %v619
    %v806 = vpack.c.b16 %v626, %v620
    %v807 = vpack.c.b16 %v627, %v621
    %v808 = vpack.c.b16 %v634, %v628
    %v809 = vpack.c.b16 %v635, %v629
    %v810 = vpack.c.b16 %v636, %v630
    %v811 = vpack.c.b16 %v637, %v631
    %v812 = vpack.c.b16 %v638, %v632
    %v813 = vpack.c.b16 %v639, %v633
    %v814 = vpack.c.b16 %v646, %v640
    %v815 = vpack.c.b16 %v647, %v641
    %v816 = vpack.c.b16 %v648, %v642
    %v817 = vpack.c.b16 %v649, %v643
    %v818 = vpack.c.b16 %v650, %v644
    %v819 = vpack.c.b16 %v651, %v645
    %v820 = vpack.c.b16 %v658, %v652
    %v821 = vpack.c.b16 %v659, %v653
    %v822 = vpack.c.b16 %v660, %v654
    %v823 = vpack.c.b16 %v661, %v655
    %v824 = vpack.c.b16 %v662, %v656
    %v825 = vpack.c.b16 %v663, %v657
    %v826 = vpack.c.b16 %v670, %v664
    %v827 = vpack.c.b16 %v671, %v665
    %v828 = vpack.c.b16 %v672, %v666
    %v829 = vpack.c.b16 %v673, %v667
    %v830 = vpack.c.b16 %v674, %v668
    %v831 = vpack.c.b16 %v675, %v669
    %v832 = vpack.c.b16 %v682, %v676
    %v833 = vpack.c.b16 %v683, %v677
    %v834 = vpack.c.b16 %v684, %v678
    %v835 = vpack.c.b16 %v685, %v679
    %v836 = vpack.c.b16 %v686, %v680
    %v837 = vpack.c.b16 %v687, %v681
    %vm988 = vcmask 130048
    %v990 = vsel %vm988, %v234, 0
    %992 = vmatprep.subr.bf16.mxu0 %v689
    %993 = vmatpush1.bf16.msra.mxu0 %v688
    %994 = vmatprep.subr.bf16.mxu0 %v695
    %995 = vmatpush1.bf16.msra.mxu0 %v694
    %996 = vmatprep.subr.bf16.mxu0 %v701
    %997 = vmatpush1.bf16.msra.mxu0 %v700
    %998 = vmatprep.subr.bf16.mxu0 %v707
    %999 = vmatpush1.bf16.msra.mxu0 %v706
    %1000 = vmatprep.subr.bf16.mxu0 %v713
    %1001 = vmatpush1.bf16.msra.mxu0 %v712
    %1002 = vmatprep.subr.bf16.mxu0 %v719
    %1003 = vmatpush1.bf16.msra.mxu0 %v718
    %1004 = vmatprep.subr.bf16.mxu0 %v725
    %1005 = vmatpush1.bf16.msra.mxu0 %v724
    %1006 = vmatprep.subr.bf16.mxu0 %v731
    %1007 = vmatpush1.bf16.msra.mxu0 %v730
    %1008 = vmatprep.subr.bf16.mxu0 %v737
    %1009 = vmatpush1.bf16.msra.mxu0 %v736
    %1010 = vmatprep.subr.bf16.mxu0 %v743
    %1011 = vmatpush1.bf16.msra.mxu0 %v742
    %1012 = vmatprep.subr.bf16.mxu0 %v749
    %1013 = vmatpush1.bf16.msra.mxu0 %v748
    %1014 = vmatprep.subr.bf16.mxu0 %v755
    %1015 = vmatpush1.bf16.msra.mxu0 %v754
    %1016 = vmatprep.subr.bf16.mxu0 %v761
    %1017 = vmatpush1.bf16.msra.mxu0 %v760
    %1018 = vmatprep.subr.bf16.mxu0 %v767
    %1019 = vmatpush1.bf16.msra.mxu0 %v766
    %1020 = vmatprep.subr.bf16.mxu0 %v773
    %1021 = vmatpush1.bf16.msra.mxu0 %v772
    %1022 = vmatprep.subr.bf16.mxu0 %v779
    %1023 = vmatpush1.bf16.msra.mxu0 %v778
    %1024 = vmatprep.mubr.bf16.mxu0 %v232
    %1025 = vmatmul.mubr.bf16.gmra.mrb[0].mxu0 %v231
    %v1026 = vpop.f32.mrb[0].mxu0
    %v1027 = vadd.f32 %v198, %v1026
    %v1028 = vpop.f32.mrb[0].mxu0
    %v1029 = vadd.f32 %v202, %v1028
    %v1030 = vpop.f32.mrb[0].mxu0
    %v1031 = vpop.f32.mrb[0].mxu0
    %1032 = vdwg.mxu0
    %1033 = vmatprep.subr.bf16.mxu0 %v785
    %1034 = vmatpush1.bf16.msra.mxu0 %v784
    %1035 = vmatprep.subr.bf16.mxu0 %v791
    %1036 = vmatpush1.bf16.msra.mxu0 %v790
    %1037 = vmatprep.subr.bf16.mxu0 %v797
    %1038 = vmatpush1.bf16.msra.mxu0 %v796
    %1039 = vmatprep.subr.bf16.mxu0 %v803
    %1040 = vmatpush1.bf16.msra.mxu0 %v802
    %1041 = vmatprep.subr.bf16.mxu0 %v809
    %1042 = vmatpush1.bf16.msra.mxu0 %v808
    %1043 = vmatprep.subr.bf16.mxu0 %v815
    %1044 = vmatpush1.bf16.msra.mxu0 %v814
    %1045 = vmatprep.subr.bf16.mxu0 %v821
    %1046 = vmatpush1.bf16.msra.mxu0 %v820
    %1047 = vmatprep.subr.bf16.mxu0 %v827
    %1048 = vmatpush1.bf16.msra.mxu0 %v826
    %1049 = vmatprep.subr.bf16.mxu0 %v833
    %1050 = vmatpush1.bf16.msra.mxu0 %v832
    %1051 = vmatprep.subr.bf16.mxu0 0
    %1052 = vmatpush1.bf16.msra.mxu0 0
    %1053 = vmatprep.subr.bf16.mxu0 0
    %1054 = vmatpush1.bf16.msra.mxu0 0
    %1055 = vmatprep.subr.bf16.mxu0 0
    %1056 = vmatpush1.bf16.msra.mxu0 0
    %1057 = vmatprep.subr.bf16.mxu0 0
    %1058 = vmatpush1.bf16.msra.mxu0 0
    %1059 = vmatprep.subr.bf16.mxu0 0
    %1060 = vmatpush1.bf16.msra.mxu0 0
    %1061 = vmatprep.subr.bf16.mxu0 0
    %1062 = vmatpush1.bf16.msra.mxu0 0
    %1063 = vmatprep.subr.bf16.mxu0 0
    %1064 = vmatpush1.bf16.msra.mxu0 0
    %1065 = vmatprep.mubr.bf16.mxu0 %v990
    %1066 = vmatmul.mubr.bf16.gmra.mrb[0].mxu0 %v233
    %v1067 = vpop.f32.mrb[0].mxu0
    %v1068 = vadd.f32 %v1027, %v1067
    %v1069 = vpop.f32.mrb[0].mxu0
    %v1070 = vadd.f32 %v1029, %v1069
    %v1071 = vpop.f32.mrb[0].mxu0
    %v1072 = vpop.f32.mrb[0].mxu0
    %1073 = vdwg.mxu0
    %1074 = vmatprep.subr.bf16.mxu0 %v691
    %1075 = vmatpush1.bf16.msra.mxu0 %v690
    %1076 = vmatprep.subr.bf16.mxu0 %v697
    %1077 = vmatpush1.bf16.msra.mxu0 %v696
    %1078 = vmatprep.subr.bf16.mxu0 %v703
    %1079 = vmatpush1.bf16.msra.mxu0 %v702
    %1080 = vmatprep.subr.bf16.mxu0 %v709
    %1081 = vmatpush1.bf16.msra.mxu0 %v708
    %1082 = vmatprep.subr.bf16.mxu0 %v715
    %1083 = vmatpush1.bf16.msra.mxu0 %v714
    %1084 = vmatprep.subr.bf16.mxu0 %v721
    %1085 = vmatpush1.bf16.msra.mxu0 %v720
    %1086 = vmatprep.subr.bf16.mxu0 %v727
    %1087 = vmatpush1.bf16.msra.mxu0 %v726
    %1088 = vmatprep.subr.bf16.mxu0 %v733
    %1089 = vmatpush1.bf16.msra.mxu0 %v732
    %1090 = vmatprep.subr.bf16.mxu0 %v739
    %1091 = vmatpush1.bf16.msra.mxu0 %v738
    %1092 = vmatprep.subr.bf16.mxu0 %v745
    %1093 = vmatpush1.bf16.msra.mxu0 %v744
    %1094 = vmatprep.subr.bf16.mxu0 %v751
    %1095 = vmatpush1.bf16.msra.mxu0 %v750
    %1096 = vmatprep.subr.bf16.mxu0 %v757
    %1097 = vmatpush1.bf16.msra.mxu0 %v756
    %1098 = vmatprep.subr.bf16.mxu0 %v763
    %1099 = vmatpush1.bf16.msra.mxu0 %v762
    %1100 = vmatprep.subr.bf16.mxu0 %v769
    %1101 = vmatpush1.bf16.msra.mxu0 %v768
    %1102 = vmatprep.subr.bf16.mxu0 %v775
    %1103 = vmatpush1.bf16.msra.mxu0 %v774
    %1104 = vmatprep.subr.bf16.mxu0 %v781
    %1105 = vmatpush1.bf16.msra.mxu0 %v780
    %1106 = vmatprep.mubr.bf16.mxu0 %v232
    %1107 = vmatmul.mubr.bf16.gmra.mrb[0].mxu0 %v231
    %v1108 = vpop.f32.mrb[0].mxu0
    %v1109 = vadd.f32 %v206, %v1108
    %v1110 = vpop.f32.mrb[0].mxu0
    %v1111 = vadd.f32 %v210, %v1110
    %v1112 = vpop.f32.mrb[0].mxu0
    %v1113 = vpop.f32.mrb[0].mxu0
    %1114 = vdwg.mxu0
    %1115 = vmatprep.subr.bf16.mxu0 %v787
    %1116 = vmatpush1.bf16.msra.mxu0 %v786
    %1117 = vmatprep.subr.bf16.mxu0 %v793
    %1118 = vmatpush1.bf16.msra.mxu0 %v792
    %1119 = vmatprep.subr.bf16.mxu0 %v799
    %1120 = vmatpush1.bf16.msra.mxu0 %v798
    %1121 = vmatprep.subr.bf16.mxu0 %v805
    %1122 = vmatpush1.bf16.msra.mxu0 %v804
    %1123 = vmatprep.subr.bf16.mxu0 %v811
    %1124 = vmatpush1.bf16.msra.mxu0 %v810
    %1125 = vmatprep.subr.bf16.mxu0 %v817
    %1126 = vmatpush1.bf16.msra.mxu0 %v816
    %1127 = vmatprep.subr.bf16.mxu0 %v823
    %1128 = vmatpush1.bf16.msra.mxu0 %v822
    %1129 = vmatprep.subr.bf16.mxu0 %v829
    %1130 = vmatpush1.bf16.msra.mxu0 %v828
    %1131 = vmatprep.subr.bf16.mxu0 %v835
    %1132 = vmatpush1.bf16.msra.mxu0 %v834
    %1133 = vmatprep.subr.bf16.mxu0 0
    %1134 = vmatpush1.bf16.msra.mxu0 0
    %1135 = vmatprep.subr.bf16.mxu0 0
    %1136 = vmatpush1.bf16.msra.mxu0 0
    %1137 = vmatprep.subr.bf16.mxu0 0
    %1138 = vmatpush1.bf16.msra.mxu0 0
    %1139 = vmatprep.subr.bf16.mxu0 0
    %1140 = vmatpush1.bf16.msra.mxu0 0
    %1141 = vmatprep.subr.bf16.mxu0 0
    %1142 = vmatpush1.bf16.msra.mxu0 0
    %1143 = vmatprep.subr.bf16.mxu0 0
    %1144 = vmatpush1.bf16.msra.mxu0 0
    %1145 = vmatprep.subr.bf16.mxu0 0
    %1146 = vmatpush1.bf16.msra.mxu0 0
    %1147 = vmatprep.mubr.bf16.mxu0 %v990
    %1148 = vmatmul.mubr.bf16.gmra.mrb[0].mxu0 %v233
    %v1149 = vpop.f32.mrb[0].mxu0
    %v1150 = vadd.f32 %v1109, %v1149
    %v1151 = vpop.f32.mrb[0].mxu0
    %v1152 = vadd.f32 %v1111, %v1151
    %v1153 = vpop.f32.mrb[0].mxu0
    %v1154 = vpop.f32.mrb[0].mxu0
    %1155 = vdwg.mxu0
    %1156 = vmatprep.subr.bf16.mxu0 %v693
    %1157 = vmatpush1.bf16.msra.mxu0 %v692
    %1158 = vmatprep.subr.bf16.mxu0 %v699
    %1159 = vmatpush1.bf16.msra.mxu0 %v698
    %1160 = vmatprep.subr.bf16.mxu0 %v705
    %1161 = vmatpush1.bf16.msra.mxu0 %v704
    %1162 = vmatprep.subr.bf16.mxu0 %v711
    %1163 = vmatpush1.bf16.msra.mxu0 %v710
    %1164 = vmatprep.subr.bf16.mxu0 %v717
    %1165 = vmatpush1.bf16.msra.mxu0 %v716
    %1166 = vmatprep.subr.bf16.mxu0 %v723
    %1167 = vmatpush1.bf16.msra.mxu0 %v722
    %1168 = vmatprep.subr.bf16.mxu0 %v729
    %1169 = vmatpush1.bf16.msra.mxu0 %v728
    %1170 = vmatprep.subr.bf16.mxu0 %v735
    %1171 = vmatpush1.bf16.msra.mxu0 %v734
    %1172 = vmatprep.subr.bf16.mxu0 %v741
    %1173 = vmatpush1.bf16.msra.mxu0 %v740
    %1174 = vmatprep.subr.bf16.mxu0 %v747
    %1175 = vmatpush1.bf16.msra.mxu0 %v746
    %1176 = vmatprep.subr.bf16.mxu0 %v753
    %1177 = vmatpush1.bf16.msra.mxu0 %v752
    %1178 = vmatprep.subr.bf16.mxu0 %v759
    %1179 = vmatpush1.bf16.msra.mxu0 %v758
    %1180 = vmatprep.subr.bf16.mxu0 %v765
    %1181 = vmatpush1.bf16.msra.mxu0 %v764
    %1182 = vmatprep.subr.bf16.mxu0 %v771
    %1183 = vmatpush1.bf16.msra.mxu0 %v770
    %1184 = vmatprep.subr.bf16.mxu0 %v777
    %1185 = vmatpush1.bf16.msra.mxu0 %v776
    %1186 = vmatprep.subr.bf16.mxu0 %v783
    %1187 = vmatpush1.bf16.msra.mxu0 %v782
    %1188 = vmatprep.mubr.bf16.mxu0 %v232
    %1189 = vmatmul.mubr.bf16.gmra.mrb[0].mxu0 %v231
    %v1190 = vpop.f32.mrb[0].mxu0
    %v1191 = vadd.f32 %v214, %v1190
    %v1192 = vpop.f32.mrb[0].mxu0
    %v1193 = vadd.f32 %v218, %v1192
    %v1194 = vpop.f32.mrb[0].mxu0
    %v1195 = vpop.f32.mrb[0].mxu0
    %1196 = vdwg.mxu0
    %1197 = vmatprep.subr.bf16.mxu0 %v789
    %1198 = vmatpush1.bf16.msra.mxu0 %v788
    %1199 = vmatprep.subr.bf16.mxu0 %v795
    %1200 = vmatpush1.bf16.msra.mxu0 %v794
    %1201 = vmatprep.subr.bf16.mxu0 %v801
    %1202 = vmatpush1.bf16.msra.mxu0 %v800
    %1203 = vmatprep.subr.bf16.mxu0 %v807
    %1204 = vmatpush1.bf16.msra.mxu0 %v806
    %1205 = vmatprep.subr.bf16.mxu0 %v813
    %1206 = vmatpush1.bf16.msra.mxu0 %v812
    %1207 = vmatprep.subr.bf16.mxu0 %v819
    %1208 = vmatpush1.bf16.msra.mxu0 %v818
    %1209 = vmatprep.subr.bf16.mxu0 %v825
    %1210 = vmatpush1.bf16.msra.mxu0 %v824
    %1211 = vmatprep.subr.bf16.mxu0 %v831
    %1212 = vmatpush1.bf16.msra.mxu0 %v830
    %1213 = vmatprep.subr.bf16.mxu0 %v837
    %1214 = vmatpush1.bf16.msra.mxu0 %v836
    %1215 = vmatprep.subr.bf16.mxu0 0
    %1216 = vmatpush1.bf16.msra.mxu0 0
    %1217 = vmatprep.subr.bf16.mxu0 0
    %1218 = vmatpush1.bf16.msra.mxu0 0
    %1219 = vmatprep.subr.bf16.mxu0 0
    %1220 = vmatpush1.bf16.msra.mxu0 0
    %1221 = vmatprep.subr.bf16.mxu0 0
    %1222 = vmatpush1.bf16.msra.mxu0 0
    %1223 = vmatprep.subr.bf16.mxu0 0
    %1224 = vmatpush1.bf16.msra.mxu0 0
    %1225 = vmatprep.subr.bf16.mxu0 0
    %1226 = vmatpush1.bf16.msra.mxu0 0
    %1227 = vmatprep.subr.bf16.mxu0 0
    %1228 = vmatpush1.bf16.msra.mxu0 0
    %1229 = vmatprep.mubr.bf16.mxu0 %v990
    %1230 = vmatmul.mubr.bf16.gmra.mrb[0].mxu0 %v233
    %v1231 = vpop.f32.mrb[0].mxu0
    %v1232 = vadd.f32 %v1191, %v1231
    %v1233 = vpop.f32.mrb[0].mxu0
    %v1234 = vadd.f32 %v1193, %v1233
    %v1235 = vpop.f32.mrb[0].mxu0
    %v1236 = vpop.f32.mrb[0].mxu0
    %1237 = vdwg.mxu0
    %v1238 = vmax.f32 %v1068, 0.0
    %v1239 = vmax.f32 %v1070, 0.0
    %v1240 = vmax.f32 %v1150, 0.0
    %v1241 = vmax.f32 %v1152, 0.0
    %v1242 = vmax.f32 %v1232, 0.0
    %v1243 = vmax.f32 %v1234, 0.0
    %v1244 = vmax.f32 %v1238, %v1241
    %v1245 = vmax.f32 %v1239, %v1242
    %v1246 = vmax.f32 %v1240, %v1243
    %v1247 = vld [vmem:[%s3] sm:$0xff]
    %v1248 = vld [vmem:[%s3 + $0x8] sm:$0xff]
    %v1249 = vld [vmem:[%s3 + $0x10] sm:$0xff]
    %v1250 = vld [vmem:[%s3 + $0x18] sm:$0xff]
    %v1251 = vld [vmem:[%s3 + $0x20] sm:$0xff]
    %v1252 = vld [vmem:[%s3 + $0x28] sm:$0xff]
    %v1253 = vld [vmem:[%s3 + $0x30] sm:$0xff]
    %v1254 = vld [vmem:[%s3 + $0x38] sm:$0xff]
    %v1255 = vld [vmem:[%s3 + $0x40] sm:$0xff]
    %v1256 = vld [vmem:[%s3 + $0x48] sm:$0xff]
    %v1257 = vld [vmem:[%s3 + $0x50] sm:$0xff]
    %v1258 = vld [vmem:[%s3 + $0x58] sm:$0xff]
    %v1259 = vld [vmem:[%s3 + $0x60] sm:$0xff]
    %v1260 = vld [vmem:[%s3 + $0x68] sm:$0xff]
    %v1261 = vld [vmem:[%s3 + $0x70] sm:$0xff]
    %v1262 = vld [vmem:[%s3 + $0x78] sm:$0xff]
    %v1263 = vld [vmem:[%s3 + $0x80] sm:$0xff]
    %v1264 = vld [vmem:[%s3 + $0x88] sm:$0xff]
    %v1265 = vld [vmem:[%s3 + $0x90] sm:$0xff]
    %v1266 = vld [vmem:[%s3 + $0x98] sm:$0xff]
    %v1267 = vld [vmem:[%s3 + $0xa0] sm:$0xff]
    %v1268 = vld [vmem:[%s3 + $0xa8] sm:$0xff]
    %v1269 = vld [vmem:[%s3 + $0xb0] sm:$0xff]
    %v1270 = vld [vmem:[%s3 + $0xb8] sm:$0xff]
    %v1271 = vld [vmem:[%s3 + $0xc0] sm:$0xff]
    %v1272 = vld [vmem:[%s3 + $0xc8] sm:$0xff]
    %v1273 = vld [vmem:[%s3 + $0xd0] sm:$0xff]
    %v1274 = vld [vmem:[%s3 + $0xd8] sm:$0xff]
    %v1275 = vld [vmem:[%s3 + $0xe0] sm:$0xff]
    %v1276 = vld [vmem:[%s3 + $0xe8] sm:$0xff]
    %v1277 = vld [vmem:[%s3 + $0xf0] sm:$0xff]
    %v1278 = vld [vmem:[%s3 + $0xf8] sm:$0xff]
    %v1279 = vld [vmem:[%s3 + $0x100] sm:$0xff]
    %v1280 = vld [vmem:[%s3 + $0x108] sm:$0xff]
    %v1281 = vld [vmem:[%s3 + $0x110] sm:$0xff]
    %v1282 = vld [vmem:[%s3 + $0x118] sm:$0xff]
    %v1283 = vld [vmem:[%s3 + $0x120] sm:$0xff]
    %v1284 = vld [vmem:[%s3 + $0x128] sm:$0xff]
    %v1285 = vld [vmem:[%s3 + $0x130] sm:$0xff]
    %v1286 = vld [vmem:[%s3 + $0x138] sm:$0xff]
    %v1287 = vld [vmem:[%s3 + $0x140] sm:$0xff]
    %v1288 = vld [vmem:[%s3 + $0x148] sm:$0xff]
    %v1289 = vld [vmem:[%s3 + $0x150] sm:$0xff]
    %v1290 = vld [vmem:[%s3 + $0x158] sm:$0xff]
    %v1291 = vld [vmem:[%s3 + $0x160] sm:$0xff]
    %v1292 = vld [vmem:[%s3 + $0x168] sm:$0xff]
    %v1293 = vld [vmem:[%s3 + $0x170] sm:$0xff]
    %v1294 = vld [vmem:[%s3 + $0x178] sm:$0xff]
    %v1295 = vld [vmem:[%s4] sm:$0x1]
    %v1297 = vlaneseq
    %v1298 = vshrl.u32 %v1297, 7
    %v1299 = vsub.s32 0, %v1298
    %v1300 = vrot.slane %v1295, %v1299
    %1302 = vmatprep.subr.mxu0 0.0
    %1303 = vmatpush1.msra.mxu0 %v1247
    %1304 = vmatprep.subr.mxu0 0.0
    %1305 = vmatpush1.msra.mxu0 %v1248
    %1306 = vmatprep.subr.mxu0 0.0
    %1307 = vmatpush1.msra.mxu0 %v1249
    %1308 = vmatprep.subr.mxu0 0.0
    %1309 = vmatpush1.msra.mxu0 %v1250
    %1310 = vmatprep.subr.mxu0 0.0
    %1311 = vmatpush1.msra.mxu0 %v1251
    %1312 = vmatprep.subr.mxu0 0.0
    %1313 = vmatpush1.msra.mxu0 %v1252
    %1314 = vmatprep.subr.mxu0 0.0
    %1315 = vmatpush1.msra.mxu0 %v1253
    %1316 = vmatprep.subr.mxu0 0.0
    %1317 = vmatpush1.msra.mxu0 %v1254
    %1318 = vmatprep.subr.mxu0 0.0
    %1319 = vmatpush1.msra.mxu0 %v1255
    %1320 = vmatprep.subr.mxu0 0.0
    %1321 = vmatpush1.msra.mxu0 %v1256
    %1322 = vmatprep.subr.mxu0 0.0
    %1323 = vmatpush1.msra.mxu0 %v1257
    %1324 = vmatprep.subr.mxu0 0.0
    %1325 = vmatpush1.msra.mxu0 %v1258
    %1326 = vmatprep.subr.mxu0 0.0
    %1327 = vmatpush1.msra.mxu0 %v1259
    %1328 = vmatprep.subr.mxu0 0.0
    %1329 = vmatpush1.msra.mxu0 %v1260
    %1330 = vmatprep.subr.mxu0 0.0
    %1331 = vmatpush1.msra.mxu0 %v1261
    %1332 = vmatprep.subr.mxu0 0.0
    %1333 = vmatpush1.msra.mxu0 %v1262
    %1334 = vmatprep.subr.mxu0 0.0
    %1335 = vmatpush1.msra.mxu0 %v1263
    %1336 = vmatprep.subr.mxu0 0.0
    %1337 = vmatpush1.msra.mxu0 %v1264
    %1338 = vmatprep.subr.mxu0 0.0
    %1339 = vmatpush1.msra.mxu0 %v1265
    %1340 = vmatprep.subr.mxu0 0.0
    %1341 = vmatpush1.msra.mxu0 %v1266
    %1342 = vmatprep.subr.mxu0 0.0
    %1343 = vmatpush1.msra.mxu0 %v1267
    %1344 = vmatprep.subr.mxu0 0.0
    %1345 = vmatpush1.msra.mxu0 %v1268
    %1346 = vmatprep.subr.mxu0 0.0
    %1347 = vmatpush1.msra.mxu0 %v1269
    %1348 = vmatprep.subr.mxu0 0.0
    %1349 = vmatpush1.msra.mxu0 %v1270
    %1350 = vmatprep.subr.mxu0 0.0
    %1351 = vmatpush1.msra.mxu0 %v1271
    %1352 = vmatprep.subr.mxu0 0.0
    %1353 = vmatpush1.msra.mxu0 %v1272
    %1354 = vmatprep.subr.mxu0 0.0
    %1355 = vmatpush1.msra.mxu0 %v1273
    %1356 = vmatprep.subr.mxu0 0.0
    %1357 = vmatpush1.msra.mxu0 %v1274
    %1358 = vmatprep.subr.mxu0 0.0
    %1359 = vmatpush1.msra.mxu0 %v1275
    %1360 = vmatprep.subr.mxu0 0.0
    %1361 = vmatpush1.msra.mxu0 %v1276
    %1362 = vmatprep.subr.mxu0 0.0
    %1363 = vmatpush1.msra.mxu0 %v1277
    %1364 = vmatprep.subr.mxu0 0.0
    %1365 = vmatpush1.msra.mxu0 %v1278
    %1366 = vmatprep.mubr.f32.mxu0 %v1245
    %1367 = vmatmul.mubr.f32.gmra.mrb[0].mxu0 %v1244
    %v1368 = vpop.f32.mrb[0].mxu0
    %v1369 = vadd.f32 %v1300, %v1368
    %v1370 = vpop.f32.mrb[0].mxu0
    %1371 = vdwg.mxu0
    %1372 = vmatprep.subr.mxu0 0.0
    %1373 = vmatpush1.msra.mxu0 %v1279
    %1374 = vmatprep.subr.mxu0 0.0
    %1375 = vmatpush1.msra.mxu0 %v1280
    %1376 = vmatprep.subr.mxu0 0.0
    %1377 = vmatpush1.msra.mxu0 %v1281
    %1378 = vmatprep.subr.mxu0 0.0
    %1379 = vmatpush1.msra.mxu0 %v1282
    %1380 = vmatprep.subr.mxu0 0.0
    %1381 = vmatpush1.msra.mxu0 %v1283
    %1382 = vmatprep.subr.mxu0 0.0
    %1383 = vmatpush1.msra.mxu0 %v1284
    %1384 = vmatprep.subr.mxu0 0.0
    %1385 = vmatpush1.msra.mxu0 %v1285
    %1386 = vmatprep.subr.mxu0 0.0
    %1387 = vmatpush1.msra.mxu0 %v1286
    %1388 = vmatprep.subr.mxu0 0.0
    %1389 = vmatpush1.msra.mxu0 %v1287
    %1390 = vmatprep.subr.mxu0 0.0
    %1391 = vmatpush1.msra.mxu0 %v1288
    %1392 = vmatprep.subr.mxu0 0.0
    %1393 = vmatpush1.msra.mxu0 %v1289
    %1394 = vmatprep.subr.mxu0 0.0
    %1395 = vmatpush1.msra.mxu0 %v1290
    %1396 = vmatprep.subr.mxu0 0.0
    %1397 = vmatpush1.msra.mxu0 %v1291
    %1398 = vmatprep.subr.mxu0 0.0
    %1399 = vmatpush1.msra.mxu0 %v1292
    %1400 = vmatprep.subr.mxu0 0.0
    %1401 = vmatpush1.msra.mxu0 %v1293
    %1402 = vmatprep.subr.mxu0 0.0
    %1403 = vmatpush1.msra.mxu0 %v1294
    %1404 = vmatprep.subr.mxu0 0.0
    %1405 = vmatpush1.msra.mxu0 0.0
    %1406 = vmatprep.subr.mxu0 0.0
    %1407 = vmatpush1.msra.mxu0 0.0
    %1408 = vmatprep.subr.mxu0 0.0
    %1409 = vmatpush1.msra.mxu0 0.0
    %1410 = vmatprep.subr.mxu0 0.0
    %1411 = vmatpush1.msra.mxu0 0.0
    %1412 = vmatprep.subr.mxu0 0.0
    %1413 = vmatpush1.msra.mxu0 0.0
    %1414 = vmatprep.subr.mxu0 0.0
    %1415 = vmatpush1.msra.mxu0 0.0
    %1416 = vmatprep.subr.mxu0 0.0
    %1417 = vmatpush1.msra.mxu0 0.0
    %1418 = vmatprep.subr.mxu0 0.0
    %1419 = vmatpush1.msra.mxu0 0.0
    %1420 = vmatprep.subr.mxu0 0.0
    %1421 = vmatpush1.msra.mxu0 0.0
    %1422 = vmatprep.subr.mxu0 0.0
    %1423 = vmatpush1.msra.mxu0 0.0
    %1424 = vmatprep.subr.mxu0 0.0
    %1425 = vmatpush1.msra.mxu0 0.0
    %1426 = vmatprep.subr.mxu0 0.0
    %1427 = vmatpush1.msra.mxu0 0.0
    %1428 = vmatprep.subr.mxu0 0.0
    %1429 = vmatpush1.msra.mxu0 0.0
    %1430 = vmatprep.subr.mxu0 0.0
    %1431 = vmatpush1.msra.mxu0 0.0
    %1432 = vmatprep.subr.mxu0 0.0
    %1433 = vmatpush1.msra.mxu0 0.0
    %1434 = vmatprep.subr.mxu0 0.0
    %1435 = vmatpush1.msra.mxu0 0.0
    %1436 = vmatprep.mubr.f32.mxu0 0.0
    %1437 = vmatmul.mubr.f32.gmra.mrb[0].mxu0 %v1246
    %v1438 = vpop.f32.mrb[0].mxu0
    %v1439 = vadd.f32 %v1369, %v1438
    %v1440 = vpop.f32.mrb[0].mxu0
    %1441 = vdwg.mxu0
    %v1442 = vmax.f32 %v1439, 0.0
    %v1443 = vld [vmem:[%s5] sm:$0xff]
    %v1444 = vld [vmem:[%s5 + $0x8] sm:$0xff]
    %v1445 = vld [vmem:[%s6] sm:$0x1]
    %v1447 = vlaneseq
    %v1448 = vshrl.u32 %v1447, 7
    %v1449 = vsub.s32 0, %v1448
    %v1450 = vrot.slane %v1445, %v1449
    %v1453 = vsel %vm988, %v1442, 0
    %1455 = vmatprep.subr.mxu0 0.0
    %1456 = vmatpush1.msra.mxu0 %v1443
    %1457 = vmatprep.subr.mxu0 0.0
    %1458 = vmatpush1.msra.mxu0 %v1444
    %1459 = vmatprep.subr.mxu0 0.0
    %1460 = vmatpush1.msra.mxu0 0.0
    %1461 = vmatprep.subr.mxu0 0.0
    %1462 = vmatpush1.msra.mxu0 0.0
    %1463 = vmatprep.subr.mxu0 0.0
    %1464 = vmatpush1.msra.mxu0 0.0
    %1465 = vmatprep.subr.mxu0 0.0
    %1466 = vmatpush1.msra.mxu0 0.0
    %1467 = vmatprep.subr.mxu0 0.0
    %1468 = vmatpush1.msra.mxu0 0.0
    %1469 = vmatprep.subr.mxu0 0.0
    %1470 = vmatpush1.msra.mxu0 0.0
    %1471 = vmatprep.subr.mxu0 0.0
    %1472 = vmatpush1.msra.mxu0 0.0
    %1473 = vmatprep.subr.mxu0 0.0
    %1474 = vmatpush1.msra.mxu0 0.0
    %1475 = vmatprep.subr.mxu0 0.0
    %1476 = vmatpush1.msra.mxu0 0.0
    %1477 = vmatprep.subr.mxu0 0.0
    %1478 = vmatpush1.msra.mxu0 0.0
    %1479 = vmatprep.subr.mxu0 0.0
    %1480 = vmatpush1.msra.mxu0 0.0
    %1481 = vmatprep.subr.mxu0 0.0
    %1482 = vmatpush1.msra.mxu0 0.0
    %1483 = vmatprep.subr.mxu0 0.0
    %1484 = vmatpush1.msra.mxu0 0.0
    %1485 = vmatprep.subr.mxu0 0.0
    %1486 = vmatpush1.msra.mxu0 0.0
    %1487 = vmatprep.subr.mxu0 0.0
    %1488 = vmatpush1.msra.mxu0 0.0
    %1489 = vmatprep.subr.mxu0 0.0
    %1490 = vmatpush1.msra.mxu0 0.0
    %1491 = vmatprep.subr.mxu0 0.0
    %1492 = vmatpush1.msra.mxu0 0.0
    %1493 = vmatprep.subr.mxu0 0.0
    %1494 = vmatpush1.msra.mxu0 0.0
    %1495 = vmatprep.subr.mxu0 0.0
    %1496 = vmatpush1.msra.mxu0 0.0
    %1497 = vmatprep.subr.mxu0 0.0
    %1498 = vmatpush1.msra.mxu0 0.0
    %1499 = vmatprep.subr.mxu0 0.0
    %1500 = vmatpush1.msra.mxu0 0.0
    %1501 = vmatprep.subr.mxu0 0.0
    %1502 = vmatpush1.msra.mxu0 0.0
    %1503 = vmatprep.subr.mxu0 0.0
    %1504 = vmatpush1.msra.mxu0 0.0
    %1505 = vmatprep.subr.mxu0 0.0
    %1506 = vmatpush1.msra.mxu0 0.0
    %1507 = vmatprep.subr.mxu0 0.0
    %1508 = vmatpush1.msra.mxu0 0.0
    %1509 = vmatprep.subr.mxu0 0.0
    %1510 = vmatpush1.msra.mxu0 0.0
    %1511 = vmatprep.subr.mxu0 0.0
    %1512 = vmatpush1.msra.mxu0 0.0
    %1513 = vmatprep.subr.mxu0 0.0
    %1514 = vmatpush1.msra.mxu0 0.0
    %1515 = vmatprep.subr.mxu0 0.0
    %1516 = vmatpush1.msra.mxu0 0.0
    %1517 = vmatprep.subr.mxu0 0.0
    %1518 = vmatpush1.msra.mxu0 0.0
    %1519 = vmatprep.mubr.f32.mxu0 0.0
    %1520 = vmatmul.mubr.f32.gmra.mrb[0].mxu0 %v1453
    %v1521 = vpop.f32.mrb[0].mxu0
    %v1522 = vadd.f32 %v1450, %v1521
    %v1523 = vpop.f32.mrb[0].mxu0
    %1524 = vdwg.mxu0
    %vm1525 = vcmask 15360
    %v1526 = vsel %vm1525, %v1522, -inf
    %1527 = vmax.xlane.f32.xlu0 %v1526
    %v1528 = vpop.xlane.xlu0 %1527
    %v1529 = vsub.f32 %v1522, %v1528
    %v1530 = vmul.f32 %v1529, 1.442695
    %v1531 = vpow.pop %v1530
    %v1532 = vsel %vm1525, %v1531, 0.0
    %1533 = vadd.xlane.f32.xlu0 %v1532
    %v1534 = vpop.xlane.xlu0 %1533
    %v1535 = vrcp.pop %v1534
    %v1536 = vmul.f32 %v1531, %v1535
    %1537 = vst.msk [vmem:[%s7] sm:$0xff] %vm1525, %v1536
    // Predicated region
    $region34: #{tpu_custom_call.1} parent=1 // pred_check
      _
    $region35: #{tpu_custom_call.1} parent=1 // pred_check_branch
      %1539 = sbr.rel (0) target = $region37
    $region36: #{tpu_custom_call.1} parent=1 // pred_region
      _
    $region37: #{tpu_custom_call.1} parent=1 // pred_fallthru
      _
    // Predicated region
    $region38: #{tpu_custom_call.1} parent=1 // pred_check
      _
    $region39: #{tpu_custom_call.1} parent=1 // pred_check_branch
      %1541 = sbr.rel (0) target = $region41
    $region40: #{tpu_custom_call.1} parent=1 // pred_region
      _
    $region41: #{tpu_custom_call.1} parent=1 // pred_fallthru
      _
    %1542 = vsyncpa [#allocation3], 1

</llo_original>
